<compile_context>
chip_gen: v5e
topology: v5e:2x2
jax: 0.10.0
libtpu: 0.0.40
codegen_flags: <defaults>
</compile_context>

<pallas_src>
import math
from functools import partial

import jax
import jax.numpy as jnp
from jax import lax
from jax.experimental import pallas as pl
from jax.experimental.pallas import tpu as pltpu

_VMEM_LIMIT_BYTES = 32 * 1024 * 1024    # safe on v5e/v6e (128 MiB) and v7x (64 MiB)
_TILE_BUDGET_BYTES = 12 * 1024 * 1024   # ~2 x (in + out) double-buffered f32 tiles


# --------------------------------------------------------------------------- #
# Kernels
# --------------------------------------------------------------------------- #
def _fold_lane_groups(v, k, feat):
    """v: (1, k*feat) holding k contiguous lane groups (k is a power of two).
    Returns (1, feat) = elementwise sum over the k groups (lane slices + adds)."""
    width = k * feat
    while width > feat:
        half = width // 2
        v = v[:, :half] + v[:, half:width]
        width = half
    return v


def _normalizer_kernel(x_ref, xhat_ref, mean_ref, std_ref, *, n_rows, k, feat):
    """Single-pass kernel: the whole row extent is resident in VMEM.
    x_ref: (rows, k*feat); column statistics pool over n_rows original rows
    (= rows * k when k rows are packed per lane slab)."""
    x = x_ref[...].astype(jnp.float32)

    # Single traversal of the resident tile: sum and sum-of-squares (f32 acc).
    s = jnp.sum(x, axis=0, keepdims=True)          # (1, k*feat)
    sq = jnp.sum(x * x, axis=0, keepdims=True)     # (1, k*feat)
    if k > 1:
        s = _fold_lane_groups(s, k, feat)          # (1, feat)
        sq = _fold_lane_groups(sq, k, feat)        # (1, feat)

    mean = s * (1.0 / n_rows)                      # (1, feat)
    # unbiased variance (torch.std default ddof=1): (sumsq - n*mean^2) / (n-1)
    var = (sq - mean * s) / (n_rows - 1)
    var = jnp.maximum(var, 0.0)                    # guard tiny f32 cancellation
    inv_std = lax.rsqrt(var)                       # EUP rsqrt; N*I multiplies on VPU
    std = jnp.sqrt(var)

    if k > 1:
        mean_b = jnp.tile(mean, (1, k))            # broadcast back over lane groups
        inv_b = jnp.tile(inv_std, (1, k))
    else:
        mean_b, inv_b = mean, inv_std

    # NOTE: matches the PyTorch module: eps is NOT applied in forward.
    xhat_ref[...] = ((x - mean_b) * inv_b).astype(xhat_ref.dtype)
    mean_ref[...] = mean.astype(mean_ref.dtype)
    std_ref[...] = std.astype(std_ref.dtype)


def _stats_kernel(x_ref, sum_ref, sq_ref):
    """Pass A of the row-streaming path: accumulate per-column sum / sumsq.
    Row axis is the last grid dim ("arbitrary"); the (1, TILE_I) outputs are
    resident accumulators across it."""
    @pl.when(pl.program_id(1) == 0)
    def _():
        sum_ref[...] = jnp.zeros_like(sum_ref)
        sq_ref[...] = jnp.zeros_like(sq_ref)

    x = x_ref[...].astype(jnp.float32)
    sum_ref[...] += jnp.sum(x, axis=0, keepdims=True)
    sq_ref[...] += jnp.sum(x * x, axis=0, keepdims=True)


def _apply_kernel(x_ref, mean_ref, inv_ref, out_ref):
    """Pass B of the row-streaming path: out = (x - mean) * inv_std."""
    x = x_ref[...].astype(jnp.float32)
    out_ref[...] = ((x - mean_ref[...]) * inv_ref[...]).astype(out_ref.dtype)


# --------------------------------------------------------------------------- #
# Tiling helpers
# --------------------------------------------------------------------------- #
def _pick_tile_cols(n_rows, n_cols, max_tile_cols):
    """Largest multiple of 128 that divides n_cols, <= max_tile_cols and within
    the double-buffered VMEM tile budget (in tile + out tile, x2 buffers)."""
    best = 128
    t = 128
    while t <= n_cols:
        fits_budget = 4 * n_rows * t * 4 <= _TILE_BUDGET_BYTES
        if n_cols % t == 0 and t <= max_tile_cols and fits_budget:
            best = t
        t += 128
    return best


def _largest_col_divisor_128(n_cols, cap):
    """Largest multiple of 128 dividing n_cols and <= cap (assumes n_cols%128==0)."""
    best = 128
    t = 128
    while t <= n_cols:
        if n_cols % t == 0 and t <= cap:
            best = t
        t += 128
    return best


def _choose_row_tile(n_rows, tile_i, max_tile_rows=None):
    """Largest divisor of n_rows that is a multiple of 8, <= max_tile_rows, and
    whose double-buffered in+out f32 tiles fit the VMEM budget. None if no such
    divisor exists (caller falls back to the resident path)."""
    divs = set()
    d = 1
    while d * d <= n_rows:
        if n_rows % d == 0:
            divs.add(d)
            divs.add(n_rows // d)
        d += 1
    cap = n_rows if max_tile_rows is None else max_tile_rows
    cand = [t for t in divs
            if t % 8 == 0 and t <= cap and 4 * t * tile_i * 4 <= _TILE_BUDGET_BYTES]
    return max(cand) if cand else None


# --------------------------------------------------------------------------- #
# pallas_call wrappers
# --------------------------------------------------------------------------- #
def _single_block_call(kern, x_arr, stat_cols):
    rows, cols = x_arr.shape
    return pl.pallas_call(
        kern,
        out_shape=(
            jax.ShapeDtypeStruct((rows, cols), x_arr.dtype),
            jax.ShapeDtypeStruct((1, stat_cols), jnp.float32),
            jax.ShapeDtypeStruct((1, stat_cols), jnp.float32),
        ),
        grid=(1,),
        in_specs=[pl.BlockSpec((rows, cols), lambda i: (0, 0))],
        out_specs=(
            pl.BlockSpec((rows, cols), lambda i: (0, 0)),
            pl.BlockSpec((1, stat_cols), lambda i: (0, 0)),
            pl.BlockSpec((1, stat_cols), lambda i: (0, 0)),
        ),
        compiler_params=pltpu.CompilerParams(
            dimension_semantics=("arbitrary",),
            vmem_limit_bytes=_VMEM_LIMIT_BYTES,
        ),
    )(x_arr)


def _feature_tiled_call(x2d, tile, N, I, x_dtype):
    kern = partial(_normalizer_kernel, n_rows=N, k=1, feat=tile)
    return pl.pallas_call(
        kern,
        out_shape=(
            jax.ShapeDtypeStruct((N, I), x_dtype),
            jax.ShapeDtypeStruct((1, I), jnp.float32),
            jax.ShapeDtypeStruct((1, I), jnp.float32),
        ),
        grid=(I // tile,),
        in_specs=[pl.BlockSpec((N, tile), lambda i: (0, i))],
        out_specs=(
            pl.BlockSpec((N, tile), lambda i: (0, i)),
            pl.BlockSpec((1, tile), lambda i: (0, i)),
            pl.BlockSpec((1, tile), lambda i: (0, i)),
        ),
        compiler_params=pltpu.CompilerParams(
            dimension_semantics=("parallel",),
            vmem_limit_bytes=_VMEM_LIMIT_BYTES,
        ),
    )(x2d)


def _two_pass_call(x2d, tile_r, tile_i, N, I, x_dtype):
    # Pass A: per-column sum / sumsq, row axis reduced via resident accumulators.
    sum2d, sq2d = pl.pallas_call(
        _stats_kernel,
        out_shape=(
            jax.ShapeDtypeStruct((1, I), jnp.float32),
            jax.ShapeDtypeStruct((1, I), jnp.float32),
        ),
        grid=(I // tile_i, N // tile_r),
        in_specs=[pl.BlockSpec((tile_r, tile_i), lambda i, r: (r, i))],
        out_specs=(
            pl.BlockSpec((1, tile_i), lambda i, r: (0, i)),
            pl.BlockSpec((1, tile_i), lambda i, r: (0, i)),
        ),
        compiler_params=pltpu.CompilerParams(
            dimension_semantics=("parallel", "arbitrary"),
            vmem_limit_bytes=_VMEM_LIMIT_BYTES,
        ),
    )(x2d)

    # Tiny (1, I) epilogue: mean / unbiased var / rsqrt done in plain JAX.
    mean2d = sum2d * (1.0 / N)
    var = jnp.maximum((sq2d - mean2d * sum2d) / (N - 1), 0.0)
    std2d = jnp.sqrt(var)
    inv2d = lax.rsqrt(var)

    # Pass B: normalize, fully parallel row/feature tiles.
    xhat2d = pl.pallas_call(
        _apply_kernel,
        out_shape=jax.ShapeDtypeStruct((N, I), x_dtype),
        grid=(I // tile_i, N // tile_r),
        in_specs=[
            pl.BlockSpec((tile_r, tile_i), lambda i, r: (r, i)),
            pl.BlockSpec((1, tile_i), lambda i, r: (0, i)),
            pl.BlockSpec((1, tile_i), lambda i, r: (0, i)),
        ],
        out_specs=pl.BlockSpec((tile_r, tile_i), lambda i, r: (r, i)),
        compiler_params=pltpu.CompilerParams(
            dimension_semantics=("parallel", "parallel"),
            vmem_limit_bytes=_VMEM_LIMIT_BYTES,
        ),
    )(x2d, mean2d, inv2d)
    return xhat2d, mean2d, std2d


# --------------------------------------------------------------------------- #
# Public entry point
# --------------------------------------------------------------------------- #
def normalizer_1d_forward(x, max_tile_cols=2048, max_tile_rows=None,
                          force_two_pass=False):
    """x: (B, D, I) float -> (x_hat (B,D,I), running_mean (I,), running_std (I,))."""
    B, D, I = x.shape
    N = B * D
    x2d = x.reshape(N, I)

    # --- Lane-dense feature dim: I multiple of 128. ----------------------- #
    if I % 128 == 0:
        # Does an (N, 128) double-buffered slab (in + out) fit the VMEM budget?
        rows_fit = 4 * N * 128 * 4 <= _TILE_BUDGET_BYTES

        if rows_fit and not force_two_pass:
            # Fast path 1: single HBM pass, grid over feature tiles.
            tile = _pick_tile_cols(N, I, max_tile_cols)
            xhat2d, mean2d, std2d = _feature_tiled_call(x2d, tile, N, I, x.dtype)
            return xhat2d.reshape(B, D, I), mean2d[0], std2d[0]

        # Fast path 1b: rows too large to keep resident -> two-pass streaming.
        tile_i = _largest_col_divisor_128(I, max_tile_cols)
        tile_r = _choose_row_tile(N, tile_i, max_tile_rows)
        if tile_r is not None:
            xhat2d, mean2d, std2d = _two_pass_call(x2d, tile_r, tile_i, N, I,
                                                   x.dtype)
            return xhat2d.reshape(B, D, I), mean2d[0], std2d[0]

        # No legal row tile (N not a multiple of 8): keep rows resident.
        tile = _pick_tile_cols(N, I, max_tile_cols)
        xhat2d, mean2d, std2d = _feature_tiled_call(x2d, tile, N, I, x.dtype)
        return xhat2d.reshape(B, D, I), mean2d[0], std2d[0]

    # --- Fast path 2: small / odd I -> pack k rows per lane slab. ---------- #
    k = 128 // math.gcd(I, 128)       # power of two; k*I is a multiple of 128
    if k > 1 and N % k == 0:
        Np, L = N // k, k * I
        xp = x2d.reshape(Np, L)       # contiguous -> free reshape in the wrapper
        kern = partial(_normalizer_kernel, n_rows=N, k=k, feat=I)
        xhatp, mean2d, std2d = _single_block_call(kern, xp, I)
        return xhatp.reshape(B, D, I), mean2d[0], std2d[0]

    # --- Generic fallback: whole (N, I) array resident, single grid step. -- #
    # TODO(synk): row-streaming fallback for odd-I inputs whose (N, I) slab
    # exceeds VMEM; not needed for the module's typical preprocessing shapes.
    kern = partial(_normalizer_kernel, n_rows=N, k=1, feat=I)
    xhat2d, mean2d, std2d = _single_block_call(kern, x2d, I)
    return xhat2d.reshape(B, D, I), mean2d[0], std2d[0]


# --------------------------------------------------------------------------- #
# Self-test
# --------------------------------------------------------------------------- #
if __name__ == "__main__":
    key = jax.random.PRNGKey(0)
    k1, k2, k3 = jax.random.split(key, 3)

    def ref_forward(xa):
        B, D, I = xa.shape
        x2 = xa.reshape(-1, I)
        m = jnp.mean(x2, axis=0)
        s = jnp.std(x2, axis=0, ddof=1)      # torch.std default is unbiased
        return ((x2 - m) / s).reshape(B, D, I), m, s

    # Case 1: module-sized small input (B=2, D=4, I=16) -> lane-packed path
    # (k=8, one 128-lane slab instead of 12.5%-utilized masked stores).
    x1 = jax.random.normal(k1, (2, 4, 16), dtype=jnp.float32)
    xh1, m1, s1 = normalizer_1d_forward(x1)
    jax.block_until_ready(xh1)
    r1, rm1, rs1 = ref_forward(x1)
    assert jnp.allclose(xh1, r1, atol=1e-5, rtol=1e-5), "x_hat mismatch (packed)"
    assert jnp.allclose(m1, rm1, atol=1e-5, rtol=1e-5), "mean mismatch (packed)"
    assert jnp.allclose(s1, rs1, atol=1e-5, rtol=1e-5), "std mismatch (packed)"

    # Case 2: lane-dense feature dim (B=2, D=8, I=512), forced TILE_I=128 so the
    # feature-tiled, double-buffered grid path (4 parallel tiles) is exercised.
    x2 = jax.random.normal(k2, (2, 8, 512), dtype=jnp.float32)
    xh2, m2, s2 = normalizer_1d_forward(x2, max_tile_cols=128)
    jax.block_until_ready(xh2)
    r2, rm2, rs2 = ref_forward(x2)
    assert jnp.allclose(xh2, r2, atol=1e-5, rtol=1e-5), "x_hat mismatch (tiled)"
    assert jnp.allclose(m2, rm2, atol=1e-5, rtol=1e-5), "mean mismatch (tiled)"
    assert jnp.allclose(s2, rs2, atol=1e-5, rtol=1e-5), "std mismatch (tiled)"

    # Case 3: force the two-pass row-streaming path (B=4, D=16, I=256) with
    # small tiles so the (parallel feature, arbitrary row) accumulator grid
    # (2 x 8 steps) is exercised end-to-end.
    x3 = jax.random.normal(k3, (4, 16, 256), dtype=jnp.float32)
    xh3, m3, s3 = normalizer_1d_forward(x3, max_tile_cols=128, max_tile_rows=8,
                                        force_two_pass=True)
    jax.block_until_ready(xh3)
    r3, rm3, rs3 = ref_forward(x3)
    assert jnp.allclose(xh3, r3, atol=1e-5, rtol=1e-5), "x_hat mismatch (2-pass)"
    assert jnp.allclose(m3, rm3, atol=1e-5, rtol=1e-5), "mean mismatch (2-pass)"
    assert jnp.allclose(s3, rs3, atol=1e-5, rtol=1e-5), "std mismatch (2-pass)"

    print("KERNEL_OK")
</pallas_src>

<mosaic_0001>
module attributes {stable_mosaic.version = 11 : i64} {
  func.func @_normalizer_kernel(%arg0: i32, %arg1: memref<1x128xf32, #tpu.memory_space<vmem>>, %arg2: memref<1x128xf32, #tpu.memory_space<vmem>>, %arg3: memref<1x16xf32, #tpu.memory_space<vmem>>, %arg4: memref<1x16xf32, #tpu.memory_space<vmem>>) attributes {dimension_semantics = [#tpu.dimension_semantics<arbitrary>], iteration_bounds = array<i64: 1>, scalar_prefetch = 0 : i64, scratch_operands = 0 : i64, tpu.core_type = #tpu.core_type<tc>, window_params = [{pipeline_mode = #tpu.pipeline_mode<synchronous>, transform_indices = @transform_0, window_bounds = array<i64: 1, 128>}, {pipeline_mode = #tpu.pipeline_mode<synchronous>, transform_indices = @transform_1, window_bounds = array<i64: 1, 128>}, {pipeline_mode = #tpu.pipeline_mode<synchronous>, transform_indices = @transform_2, window_bounds = array<i64: 1, 16>}, {pipeline_mode = #tpu.pipeline_mode<synchronous>, transform_indices = @transform_3, window_bounds = array<i64: 1, 16>}]} {
    %c0 = arith.constant 0 : index
    %c0_0 = arith.constant 0 : index
    %0 = vector.load %arg1[%c0, %c0_0] : memref<1x128xf32, #tpu.memory_space<vmem>>, vector<1x128xf32>
    %cst = arith.constant dense<0.000000e+00> : vector<128xf32>
    %1 = vector.multi_reduction <add>, %0, %cst [0] : vector<1x128xf32> to vector<128xf32>
    %2 = vector.shape_cast %1 : vector<128xf32> to vector<1x128xf32>
    %3 = arith.mulf %0, %0 : vector<1x128xf32>
    %cst_1 = arith.constant dense<0.000000e+00> : vector<128xf32>
    %4 = vector.multi_reduction <add>, %3, %cst_1 [0] : vector<1x128xf32> to vector<128xf32>
    %5 = vector.shape_cast %4 : vector<128xf32> to vector<1x128xf32>
    %6 = vector.extract_strided_slice %2 {offsets = [0, 0], sizes = [1, 64], strides = [1, 1]} : vector<1x128xf32> to vector<1x64xf32>
    %7 = vector.extract_strided_slice %2 {offsets = [0, 64], sizes = [1, 64], strides = [1, 1]} : vector<1x128xf32> to vector<1x64xf32>
    %8 = arith.addf %6, %7 : vector<1x64xf32>
    %9 = vector.extract_strided_slice %8 {offsets = [0, 0], sizes = [1, 32], strides = [1, 1]} : vector<1x64xf32> to vector<1x32xf32>
    %10 = vector.extract_strided_slice %8 {offsets = [0, 32], sizes = [1, 32], strides = [1, 1]} : vector<1x64xf32> to vector<1x32xf32>
    %11 = arith.addf %9, %10 : vector<1x32xf32>
    %12 = vector.extract_strided_slice %11 {offsets = [0, 0], sizes = [1, 16], strides = [1, 1]} : vector<1x32xf32> to vector<1x16xf32>
    %13 = vector.extract_strided_slice %11 {offsets = [0, 16], sizes = [1, 16], strides = [1, 1]} : vector<1x32xf32> to vector<1x16xf32>
    %14 = arith.addf %12, %13 : vector<1x16xf32>
    %15 = vector.extract_strided_slice %5 {offsets = [0, 0], sizes = [1, 64], strides = [1, 1]} : vector<1x128xf32> to vector<1x64xf32>
    %16 = vector.extract_strided_slice %5 {offsets = [0, 64], sizes = [1, 64], strides = [1, 1]} : vector<1x128xf32> to vector<1x64xf32>
    %17 = arith.addf %15, %16 : vector<1x64xf32>
    %18 = vector.extract_strided_slice %17 {offsets = [0, 0], sizes = [1, 32], strides = [1, 1]} : vector<1x64xf32> to vector<1x32xf32>
    %19 = vector.extract_strided_slice %17 {offsets = [0, 32], sizes = [1, 32], strides = [1, 1]} : vector<1x64xf32> to vector<1x32xf32>
    %20 = arith.addf %18, %19 : vector<1x32xf32>
    %21 = vector.extract_strided_slice %20 {offsets = [0, 0], sizes = [1, 16], strides = [1, 1]} : vector<1x32xf32> to vector<1x16xf32>
    %22 = vector.extract_strided_slice %20 {offsets = [0, 16], sizes = [1, 16], strides = [1, 1]} : vector<1x32xf32> to vector<1x16xf32>
    %23 = arith.addf %21, %22 : vector<1x16xf32>
    %cst_2 = arith.constant 1.250000e-01 : f32
    %24 = vector.broadcast %cst_2 : f32 to vector<1x16xf32>
    %25 = arith.mulf %14, %24 : vector<1x16xf32>
    %26 = arith.mulf %25, %14 : vector<1x16xf32>
    %27 = arith.subf %23, %26 : vector<1x16xf32>
    %cst_3 = arith.constant 7.000000e+00 : f32
    %28 = vector.broadcast %cst_3 : f32 to vector<1x16xf32>
    %29 = arith.divf %27, %28 : vector<1x16xf32>
    %cst_4 = arith.constant 0.000000e+00 : f32
    %30 = vector.broadcast %cst_4 : f32 to vector<1x16xf32>
    %31 = arith.maximumf %29, %30 : vector<1x16xf32>
    %32 = math.rsqrt %31 : vector<1x16xf32>
    %33 = math.sqrt %31 : vector<1x16xf32>
    %34 = tpu.concatenate %25, %25, %25, %25, %25, %25, %25, %25 in 1 : vector<1x16xf32>, vector<1x16xf32>, vector<1x16xf32>, vector<1x16xf32>, vector<1x16xf32>, vector<1x16xf32>, vector<1x16xf32>, vector<1x16xf32> -> vector<1x128xf32>
    %35 = tpu.concatenate %32, %32, %32, %32, %32, %32, %32, %32 in 1 : vector<1x16xf32>, vector<1x16xf32>, vector<1x16xf32>, vector<1x16xf32>, vector<1x16xf32>, vector<1x16xf32>, vector<1x16xf32>, vector<1x16xf32> -> vector<1x128xf32>
    %36 = arith.subf %0, %34 : vector<1x128xf32>
    %37 = arith.mulf %36, %35 : vector<1x128xf32>
    %c0_5 = arith.constant 0 : index
    %c0_6 = arith.constant 0 : index
    %38 = vector.load %arg2[%c0_5, %c0_6] : memref<1x128xf32, #tpu.memory_space<vmem>>, vector<1x128xf32>
    tpu.vector_store %arg2[%c0_5, %c0_6], %37 {strides = array<i32>} : memref<1x128xf32, #tpu.memory_space<vmem>>, vector<1x128xf32>,
    %c0_7 = arith.constant 0 : index
    %c0_8 = arith.constant 0 : index
    %39 = vector.load %arg3[%c0_7, %c0_8] : memref<1x16xf32, #tpu.memory_space<vmem>>, vector<1x16xf32>
    tpu.vector_store %arg3[%c0_7, %c0_8], %25 {strides = array<i32>} : memref<1x16xf32, #tpu.memory_space<vmem>>, vector<1x16xf32>,
    %c0_9 = arith.constant 0 : index
    %c0_10 = arith.constant 0 : index
    %40 = vector.load %arg4[%c0_9, %c0_10] : memref<1x16xf32, #tpu.memory_space<vmem>>, vector<1x16xf32>
    tpu.vector_store %arg4[%c0_9, %c0_10], %33 {strides = array<i32>} : memref<1x16xf32, #tpu.memory_space<vmem>>, vector<1x16xf32>,
    return
  }
  func.func @transform_0(%arg0: i32) -> (i32, i32) {
    %c0_i32 = arith.constant 0 : i32
    %c0_i32_0 = arith.constant 0 : i32
    %c0_i32_1 = arith.constant 0 : i32
    return %c0_i32, %c0_i32_0 : i32, i32
  }
  func.func @transform_1(%arg0: i32) -> (i32, i32) {
    %c0_i32 = arith.constant 0 : i32
    %c0_i32_0 = arith.constant 0 : i32
    %c0_i32_1 = arith.constant 0 : i32
    return %c0_i32, %c0_i32_0 : i32, i32
  }
  func.func @transform_2(%arg0: i32) -> (i32, i32) {
    %c0_i32 = arith.constant 0 : i32
    %c0_i32_0 = arith.constant 0 : i32
    %c0_i32_1 = arith.constant 0 : i32
    return %c0_i32, %c0_i32_0 : i32, i32
  }
  func.func @transform_3(%arg0: i32) -> (i32, i32) {
    %c0_i32 = arith.constant 0 : i32
    %c0_i32_0 = arith.constant 0 : i32
    %c0_i32_1 = arith.constant 0 : i32
    return %c0_i32, %c0_i32_0 : i32, i32
  }
}

</mosaic_0001>

<llo_original>
// kernel: tpu_custom_call.1
$region0: #{tpu_custom_call.1}
  #allocation0 [shape = 'u32[]', space=smem, size = 0x4, offset = 0x4, fixed_abs, tag = 'smem constant byte address 0x4 - core index']
  #allocation1 [shape = 'u32[72,128]{1,0:T(1,128)}', space=vmem, size = 0x9000, scoped, tag = 'internal scratch']
  %s0 = inlined_call_operand.hbm [shape: f32[1,128], index: 0, kind: input, shape index: {}]
  %s1 = inlined_call_operand.hbm [shape: f32[1,128], index: 1, kind: output, shape index: {0}]
  %s2 = inlined_call_operand.hbm [shape: f32[1,16], index: 2, kind: output, shape index: {1}]
  %s3 = inlined_call_operand.hbm [shape: f32[1,16], index: 3, kind: output, shape index: {2}]
  %4 = xla_tuple %s1, %s2, %s3
  %s5 = sld [smem:[#allocation0]]
  $region34: #{tpu_custom_call.1} parent=0
    _
  %s7 = ssub.s32 1, %s5
  %s8 = scalar_select 0, %s7, %s5
  $region1: #{tpu_custom_call.1} parent=0
    #allocation2 [shape = 'u8[512]{0}', space=vmem, size = 0x400, scoped, tag = 'input window, operand 0, single buffered']
    #allocation3 [shape = 's32[1]{0}', space=sflag, size = 0x4, scoped, tag = 'scoped memory for tpu_custom_call.1']
    #allocation4 [shape = 's32[1]{0}', space=sflag, size = 0x4, scoped, tag = 'scoped memory for tpu_custom_call.1']
    #allocation5 [shape = 'u8[512]{0}', space=vmem, size = 0x400, scoped, tag = 'output window, operand 0, single buffered']
    #allocation6 [shape = 'u8[512]{0}', space=vmem, size = 0x400, scoped, tag = 'output window, operand 1, single buffered']
    #allocation7 [shape = 's32[1]{0}', space=sflag, size = 0x4, scoped, tag = 'scoped memory for tpu_custom_call.1']
    #allocation8 [shape = 'u8[512]{0}', space=vmem, size = 0x400, scoped, tag = 'output window, operand 2, single buffered']
    %9 = vsyncpa [#allocation3], 0
    %10 = vsyncpa [#allocation4], 0
    %11 = vsyncpa [#allocation7], 0
    // Predicated region
    $region2: #{tpu_custom_call.1} parent=1 // pred_check
      _
    $region3: #{tpu_custom_call.1} parent=1 // pred_check_branch
      %13 = sbr.rel (0) target = $region5
    $region4: #{tpu_custom_call.1} parent=1 // pred_region
      %15 = vsyncadd [#allocation3], 0
      %s17 = sshll.u32 %s0, 4
      %s18 = int_to_ptr.hbm [resolvable:$true] %s17
      %s19 = sshll.u32 [#allocation2], 4
      %s20 = int_to_ptr.vmem [resolvable:$true] %s19
      %22 = dma.hbm_to_vmem [thread:$0]  %s18, 16, %s20, [#allocation3]
    $region5: #{tpu_custom_call.1} parent=1 // pred_fallthru
      _
    // Predicated region
    $region6: #{tpu_custom_call.1} parent=1 // pred_check
      _
    $region7: #{tpu_custom_call.1} parent=1 // pred_check_branch
      %24 = sbr.rel (0) target = $region9
    $region8: #{tpu_custom_call.1} parent=1 // pred_region
      %26 = dma.done [#allocation3], 16
    $region9: #{tpu_custom_call.1} parent=1 // pred_fallthru
      _
    %v27 = vld [vmem:[#allocation2] sm:$0x1]
    %v28 = vadd.f32 %v27, 0.0
    %v29 = vmul.f32 %v27, %v27
    %v30 = vadd.f32 %v29, 0.0
    %32 = vrot.lane.b32.xlu0 %v28, 64
    %v33 = vpop.permute.xlu0 %32
    %v35 = vadd.f32 %v28, %v33
    %37 = vrot.lane.b32.xlu0 %v35, 96
    %v38 = vpop.permute.xlu0 %37
    %v40 = vadd.f32 %v35, %v38
    %42 = vrot.lane.b32.xlu0 %v40, 112
    %v43 = vpop.permute.xlu0 %42
    %v45 = vadd.f32 %v40, %v43
    %47 = vrot.lane.b32.xlu0 %v30, 64
    %v48 = vpop.permute.xlu0 %47
    %v50 = vadd.f32 %v30, %v48
    %52 = vrot.lane.b32.xlu0 %v50, 96
    %v53 = vpop.permute.xlu0 %52
    %v55 = vadd.f32 %v50, %v53
    %57 = vrot.lane.b32.xlu0 %v55, 112
    %v58 = vpop.permute.xlu0 %57
    %v60 = vadd.f32 %v55, %v58
    %v61 = vmul.f32 %v45, 0.125
    %v62 = vmul.f32 %v61, %v45
    %v63 = vsub.f32 %v60, %v62
    %v64 = vrcp.pop 7.0
    %v65 = vmul.f32 7.0, %v64
    %v66 = vsub.f32 1.0, %v65
    %v67 = vmul.f32 %v64, %v66
    %v68 = vadd.f32 %v64, %v67
    %vm69 = vweird.f32 %v64
    %v70 = vsel %vm69, %v64, %v68
    %v71 = vmul.f32 %v63, %v70
    %v72 = vmax.f32 %v71, 0.0
    %v73 = vrsqrt.pop %v72
    %v74 = vmul.f32 %v73, %v72
    %v75 = vmul.f32 %v74, %v73
    %v76 = vmul.f32 0.5, %v75
    %v77 = vsub.f32 1.5, %v76
    %v78 = vmul.f32 %v73, %v77
    %vm79 = vweird.f32 %v72
    %vm80 = vweird.f32 %v73
    %vm81 = vmor %vm79, %vm80
    %v82 = vsel %vm81, %v73, %v78
    %v83 = vrsqrt.pop %v72
    %v84 = vmul.f32 %v83, %v72
    %v85 = vmul.f32 %v84, %v83
    %v86 = vmul.f32 0.5, %v85
    %v87 = vsub.f32 1.5, %v86
    %v88 = vmul.f32 %v83, %v87
    %v89 = vmul.f32 %v72, %v88
    %vm90 = vcmp.eq.f32.partialorder %v72, inf
    %v91 = vsel %vm90, %v72, %v89
    %vm92 = vcmp.eq.f32.partialorder %v72, 0.0
    %v93 = vand.u32 %v72, 2147483648
    %v94 = vsel %vm92, %v93, %v91
    %v96 = vperm.slane %v61, 0
    %97 = vrot.lane.b32.xlu0 %v96, 16
    %v98 = vpop.permute.xlu0 %97
    %100 = vrot.lane.b32.xlu0 %v96, 32
    %v101 = vpop.permute.xlu0 %100
    %103 = vrot.lane.b32.xlu0 %v96, 48
    %v104 = vpop.permute.xlu0 %103
    %106 = vrot.lane.b32.xlu0 %v96, 64
    %v107 = vpop.permute.xlu0 %106
    %109 = vrot.lane.b32.xlu0 %v96, 80
    %v110 = vpop.permute.xlu0 %109
    %112 = vrot.lane.b32.xlu0 %v96, 96
    %v113 = vpop.permute.xlu0 %112
    %115 = vrot.lane.b32.xlu0 %v96, 112
    %v116 = vpop.permute.xlu0 %115
    %vm118 = vcmask 130048
    %v119 = vsel %vm118, %v61, %v98
    %vm120 = vcmask 261120
    %v121 = vsel %vm120, %v119, %v101
    %vm122 = vcmask 392192
    %v123 = vsel %vm122, %v121, %v104
    %vm124 = vcmask 523264
    %v125 = vsel %vm124, %v123, %v107
    %vm126 = vcmask 654336
    %v127 = vsel %vm126, %v125, %v110
    %vm128 = vcmask 785408
    %v129 = vsel %vm128, %v127, %v113
    %vm130 = vcmask 916480
    %v131 = vsel %vm130, %v129, %v116
    %v133 = vperm.slane %v82, 0
    %134 = vrot.lane.b32.xlu0 %v133, 16
    %v135 = vpop.permute.xlu0 %134
    %137 = vrot.lane.b32.xlu0 %v133, 32
    %v138 = vpop.permute.xlu0 %137
    %140 = vrot.lane.b32.xlu0 %v133, 48
    %v141 = vpop.permute.xlu0 %140
    %143 = vrot.lane.b32.xlu0 %v133, 64
    %v144 = vpop.permute.xlu0 %143
    %146 = vrot.lane.b32.xlu0 %v133, 80
    %v147 = vpop.permute.xlu0 %146
    %149 = vrot.lane.b32.xlu0 %v133, 96
    %v150 = vpop.permute.xlu0 %149
    %152 = vrot.lane.b32.xlu0 %v133, 112
    %v153 = vpop.permute.xlu0 %152
    %v155 = vsel %vm118, %v82, %v135
    %v156 = vsel %vm120, %v155, %v138
    %v157 = vsel %vm122, %v156, %v141
    %v158 = vsel %vm124, %v157, %v144
    %v159 = vsel %vm126, %v158, %v147
    %v160 = vsel %vm128, %v159, %v150
    %v161 = vsel %vm130, %v160, %v153
    %v162 = vsub.f32 %v27, %v131
    %v163 = vmul.f32 %v162, %v161
    %164 = vst [vmem:[#allocation5] sm:$0x1] %v163
    %vm165 = vcmask 122880
    %166 = vst.msk [vmem:[#allocation6] sm:$0x1] %vm165, %v61
    %167 = vst.msk [vmem:[#allocation8] sm:$0x1] %vm165, %v94
    // Predicated region
    $region10: #{tpu_custom_call.1} parent=1 // pred_check
      _
    $region11: #{tpu_custom_call.1} parent=1 // pred_check_branch
      %169 = sbr.rel (0) target = $region13
    $region12: #{tpu_custom_call.1} parent=1 // pred_region
      %171 = vsyncadd [#allocation4], 0
      %s173 = sshll.u32 [#allocation5], 4
      %s174 = int_to_ptr.vmem [resolvable:$true] %s173
      %s175 = sshll.u32 %s1, 4
      %s176 = int_to_ptr.hbm [resolvable:$true] %s175
      %178 = dma.vmem_to_hbm [thread:$0]  %s174, 16, %s176, [#allocation4]
    $region13: #{tpu_custom_call.1} parent=1 // pred_fallthru
      _
    // Predicated region
    $region14: #{tpu_custom_call.1} parent=1 // pred_check
      _
    $region15: #{tpu_custom_call.1} parent=1 // pred_check_branch
      %180 = sbr.rel (0) target = $region17
    $region16: #{tpu_custom_call.1} parent=1 // pred_region
      %182 = vsyncadd [#allocation7], 0
      %s184 = sshll.u32 [#allocation6], 4
      %s185 = int_to_ptr.vmem [resolvable:$true] %s184
      %s186 = sshll.u32 %s2, 4
      %s187 = int_to_ptr.hbm [resolvable:$true] %s186
      %189 = dma.vmem_to_hbm [thread:$0]  %s185, 16, %s187, [#allocation7]
    $region17: #{tpu_custom_call.1} parent=1 // pred_fallthru
      _
    // Predicated region
    $region18: #{tpu_custom_call.1} parent=1 // pred_check
      _
    $region19: #{tpu_custom_call.1} parent=1 // pred_check_branch
      %191 = sbr.rel (0) target = $region21
    $region20: #{tpu_custom_call.1} parent=1 // pred_region
      %193 = vsyncadd [#allocation7], 0
      %s195 = sshll.u32 [#allocation8], 4
      %s196 = int_to_ptr.vmem [resolvable:$true] %s195
      %s197 = sshll.u32 %s3, 4
      %s198 = int_to_ptr.hbm [resolvable:$true] %s197
      %200 = dma.vmem_to_hbm [thread:$0]  %s196, 16, %s198, [#allocation7]
    $region21: #{tpu_custom_call.1} parent=1 // pred_fallthru
      _
    // Predicated region
    $region22: #{tpu_custom_call.1} parent=1 // pred_check
      _
    $region23: #{tpu_custom_call.1} parent=1 // pred_check_branch
      %202 = sbr.rel (0) target = $region25
    $region24: #{tpu_custom_call.1} parent=1 // pred_region
      %204 = dma.done [#allocation4], 16
    $region25: #{tpu_custom_call.1} parent=1 // pred_fallthru
      _
    // Predicated region
    $region26: #{tpu_custom_call.1} parent=1 // pred_check
      _
    $region27: #{tpu_custom_call.1} parent=1 // pred_check_branch
      %206 = sbr.rel (0) target = $region29
    $region28: #{tpu_custom_call.1} parent=1 // pred_region
      %208 = dma.done [#allocation7], 16
    $region29: #{tpu_custom_call.1} parent=1 // pred_fallthru
      _
    // Predicated region
    $region30: #{tpu_custom_call.1} parent=1 // pred_check
      _
    $region31: #{tpu_custom_call.1} parent=1 // pred_check_branch
      %210 = sbr.rel (0) target = $region33
    $region32: #{tpu_custom_call.1} parent=1 // pred_region
      %212 = dma.done [#allocation7], 16
    $region33: #{tpu_custom_call.1} parent=1 // pred_fallthru
      _
    %213 = vsyncpa [#allocation3], 1
    %214 = vsyncpa [#allocation4], 1
    %215 = vsyncpa [#allocation7], 1

</llo_original>
